<compile_context>
chip_gen: v7x
topology: tpu7x:2x2x1
jax: 0.10.0
libtpu: 0.0.40
codegen_flags: <defaults>
</compile_context>

<pallas_src>
import functools

import jax
import jax.numpy as jnp
from jax import lax
from jax.experimental import pallas as pl
from jax.experimental.pallas import tpu as pltpu

OBS_SIZE = 6
HIDDEN = 4
AC_SIZE = 8

# Padded tile sizes.
B_TILE = 8      # batch rows per grid step (sublane tile)
IN_PAD = 128    # padded feature width for x (lanes) / W1 rows
H_PAD = 8       # padded hidden width (W1 cols, b1, W2 rows)
OUT_PAD = 128   # padded logits width (W2 cols, b2, output lanes)


def _mlp_argmax_kernel(x_ref, w1_ref, b1_ref, w2_ref, b2_ref, out_ref, *, ac_size):
    x = x_ref[...]                                                   # (B_TILE, IN_PAD) f32
    # Layer 1: Linear(OBS_SIZE, HIDDEN) + Sigmoid on the small (B_TILE, H_PAD) tile.
    h = jnp.dot(x, w1_ref[...], preferred_element_type=jnp.float32) + b1_ref[...]
    h = jax.nn.sigmoid(h)                                            # (B_TILE, H_PAD)
    # Layer 2: Linear(HIDDEN, AC_SIZE).  Padded hidden lanes are sigmoid(0)=0.5 but the
    # corresponding W2 rows are exactly zero, so they contribute nothing to the logits.
    logits = jnp.dot(h, w2_ref[...], preferred_element_type=jnp.float32) + b2_ref[...]

    # argmax over the last dim, restricted to the first ac_size lanes.
    lane_ids = lax.broadcasted_iota(jnp.int32, logits.shape, 1)      # (B_TILE, OUT_PAD)
    masked = jnp.where(lane_ids < ac_size, logits, -jnp.inf)
    max_val = jnp.max(masked, axis=-1, keepdims=True)                # (B_TILE, 1)
    # First (smallest) index attaining the max, matching torch.argmax tie-breaking.
    cand = jnp.where(masked >= max_val, lane_ids, jnp.int32(OUT_PAD))
    idx = jnp.min(cand, axis=-1, keepdims=True)                      # (B_TILE, 1)
    out_ref[...] = jnp.broadcast_to(idx, out_ref.shape)              # lane-dense store


def make_simple_mlp_argmax(w1, b1, w2, b2):
    """Pad the weights once (hoisted out of the per-call path); return a jitted callable."""
    w1_p = jnp.zeros((IN_PAD, H_PAD), jnp.float32).at[:OBS_SIZE, :HIDDEN].set(
        jnp.asarray(w1, jnp.float32))
    b1_p = jnp.zeros((1, H_PAD), jnp.float32).at[0, :HIDDEN].set(
        jnp.asarray(b1, jnp.float32))
    # INVARIANT: rows HIDDEN..H_PAD-1 of w2_p must stay exactly zero -- the padded hidden
    # lanes evaluate to sigmoid(0)=0.5 and would otherwise leak into the logits.
    w2_p = jnp.zeros((H_PAD, OUT_PAD), jnp.float32).at[:HIDDEN, :AC_SIZE].set(
        jnp.asarray(w2, jnp.float32))
    b2_p = jnp.zeros((1, OUT_PAD), jnp.float32).at[0, :AC_SIZE].set(
        jnp.asarray(b2, jnp.float32))

    kernel = functools.partial(_mlp_argmax_kernel, ac_size=AC_SIZE)

    @jax.jit
    def run(x):
        B = x.shape[0]
        n_tiles = pl.cdiv(B, B_TILE)
        b_pad = n_tiles * B_TILE
        # Only x needs per-call padding.
        x_p = jnp.zeros((b_pad, IN_PAD), jnp.float32).at[:B, :OBS_SIZE].set(
            x.astype(jnp.float32))
        out = pl.pallas_call(
            kernel,
            out_shape=jax.ShapeDtypeStruct((b_pad, OUT_PAD), jnp.int32),
            grid=(n_tiles,),
            in_specs=[
                pl.BlockSpec((B_TILE, IN_PAD), lambda i: (i, 0)),   # x: batch-tiled
                pl.BlockSpec((IN_PAD, H_PAD), lambda i: (0, 0)),    # W1: broadcast
                pl.BlockSpec((1, H_PAD), lambda i: (0, 0)),         # b1
                pl.BlockSpec((H_PAD, OUT_PAD), lambda i: (0, 0)),   # W2
                pl.BlockSpec((1, OUT_PAD), lambda i: (0, 0)),       # b2
            ],
            out_specs=pl.BlockSpec((B_TILE, OUT_PAD), lambda i: (i, 0)),
            compiler_params=pltpu.CompilerParams(
                dimension_semantics=("parallel",)),
        )(x_p, w1_p, b1_p, w2_p, b2_p)
        # torch.argmax returns int64; we return int32 indices (same values).
        return out[:B, 0]

    return run


def _reference(x, w1, b1, w2, b2):
    h = jax.nn.sigmoid(x @ w1 + b1)
    logits = h @ w2 + b2
    return jnp.argmax(logits, axis=-1).astype(jnp.int32)


if __name__ == "__main__":
    key = jax.random.PRNGKey(0)
    kx, k1, k2, k3, k4 = jax.random.split(key, 5)

    B = 8
    x = jax.random.normal(kx, (B, OBS_SIZE), jnp.float32)

    # Deterministic init mimicking nn.Linear default: U(-1/sqrt(fan_in), 1/sqrt(fan_in)).
    bound1 = 1.0 / (OBS_SIZE ** 0.5)
    w1 = jax.random.uniform(k1, (OBS_SIZE, HIDDEN), jnp.float32, -bound1, bound1)
    b1 = jax.random.uniform(k2, (HIDDEN,), jnp.float32, -bound1, bound1)
    bound2 = 1.0 / (HIDDEN ** 0.5)
    w2 = jax.random.uniform(k3, (HIDDEN, AC_SIZE), jnp.float32, -bound2, bound2)
    b2 = jax.random.uniform(k4, (AC_SIZE,), jnp.float32, -bound2, bound2)

    mlp_argmax = make_simple_mlp_argmax(w1, b1, w2, b2)

    out = jax.block_until_ready(mlp_argmax(x))
    ref = _reference(x, w1, b1, w2, b2)
    assert out.shape == (B,)
    assert jnp.array_equal(out, ref), (out, ref)

    # Extra check: B not a multiple of the batch tile (exercises padding path).
    x3 = jax.random.normal(jax.random.PRNGKey(1), (3, OBS_SIZE), jnp.float32)
    out3 = jax.block_until_ready(mlp_argmax(x3))
    assert jnp.array_equal(out3, _reference(x3, w1, b1, w2, b2)), out3

    print("KERNEL_OK")
</pallas_src>

<mosaic_0001>
module attributes {stable_mosaic.version = 11 : i64} {
  func.func @_mlp_argmax_kernel(%arg0: i32, %arg1: memref<8x128xf32, #tpu.memory_space<vmem>>, %arg2: memref<128x8xf32, #tpu.memory_space<vmem>>, %arg3: memref<1x8xf32, #tpu.memory_space<vmem>>, %arg4: memref<8x128xf32, #tpu.memory_space<vmem>>, %arg5: memref<1x128xf32, #tpu.memory_space<vmem>>, %arg6: memref<8x128xi32, #tpu.memory_space<vmem>>) attributes {dimension_semantics = [#tpu.dimension_semantics<parallel>], iteration_bounds = array<i64: 1>, scalar_prefetch = 0 : i64, scratch_operands = 0 : i64, tpu.core_type = #tpu.core_type<tc>, window_params = [{transform_indices = @transform_0, window_bounds = array<i64: 8, 128>}, {pipeline_mode = #tpu.pipeline_mode<synchronous>, transform_indices = @transform_1, window_bounds = array<i64: 128, 8>}, {pipeline_mode = #tpu.pipeline_mode<synchronous>, transform_indices = @transform_2, window_bounds = array<i64: 1, 8>}, {pipeline_mode = #tpu.pipeline_mode<synchronous>, transform_indices = @transform_3, window_bounds = array<i64: 8, 128>}, {pipeline_mode = #tpu.pipeline_mode<synchronous>, transform_indices = @transform_4, window_bounds = array<i64: 1, 128>}, {transform_indices = @transform_5, window_bounds = array<i64: 8, 128>}]} {
    %c0 = arith.constant 0 : index
    %c0_0 = arith.constant 0 : index
    %0 = vector.load %arg1[%c0, %c0_0] : memref<8x128xf32, #tpu.memory_space<vmem>>, vector<8x128xf32>
    %c0_1 = arith.constant 0 : index
    %c0_2 = arith.constant 0 : index
    %1 = vector.load %arg2[%c0_1, %c0_2] : memref<128x8xf32, #tpu.memory_space<vmem>>, vector<128x8xf32>
    %cst = arith.constant dense<0.000000e+00> : vector<8x8xf32>
    %2 = tpu.matmul %0, %1, %cst {dimension_numbers = #tpu.dot_dimension_numbers<[1], [0], [0], [1], [0, 0, 1, 1], [], []>} : vector<8x128xf32>, vector<128x8xf32>, vector<8x8xf32> -> vector<8x8xf32>
    %c0_3 = arith.constant 0 : index
    %c0_4 = arith.constant 0 : index
    %3 = vector.load %arg3[%c0_3, %c0_4] : memref<1x8xf32, #tpu.memory_space<vmem>>, vector<1x8xf32>
    %4 = vector.broadcast %3 : vector<1x8xf32> to vector<8x8xf32>
    %5 = arith.addf %2, %4 : vector<8x8xf32>
    %6 = arith.negf %5 : vector<8x8xf32>
    %7 = math.exp %6 : vector<8x8xf32>
    %cst_5 = arith.constant 1.000000e+00 : f32
    %8 = vector.broadcast %cst_5 : f32 to vector<8x8xf32>
    %9 = arith.addf %8, %7 : vector<8x8xf32>
    %10 = arith.divf %8, %9 : vector<8x8xf32>
    %c0_6 = arith.constant 0 : index
    %c0_7 = arith.constant 0 : index
    %11 = vector.load %arg4[%c0_6, %c0_7] : memref<8x128xf32, #tpu.memory_space<vmem>>, vector<8x128xf32>
    %cst_8 = arith.constant dense<0.000000e+00> : vector<8x128xf32>
    %12 = tpu.matmul %10, %11, %cst_8 {dimension_numbers = #tpu.dot_dimension_numbers<[1], [0], [0], [1], [0, 0, 1, 1], [], []>} : vector<8x8xf32>, vector<8x128xf32>, vector<8x128xf32> -> vector<8x128xf32>
    %c0_9 = arith.constant 0 : index
    %c0_10 = arith.constant 0 : index
    %13 = vector.load %arg5[%c0_9, %c0_10] : memref<1x128xf32, #tpu.memory_space<vmem>>, vector<1x128xf32>
    %14 = vector.broadcast %13 : vector<1x128xf32> to vector<8x128xf32>
    %15 = arith.addf %12, %14 : vector<8x128xf32>
    %16 = tpu.iota {dimensions = array<i32: 1>} : vector<8x128xi32>
    %c8_i32 = arith.constant 8 : i32
    %17 = vector.broadcast %c8_i32 : i32 to vector<8x128xi32>
    %18 = arith.cmpi slt, %16, %17 : vector<8x128xi32>
    %cst_11 = arith.constant 0xFF800000 : f32
    %19 = vector.broadcast %cst_11 : f32 to vector<8x128xf32>
    %20 = arith.select %18, %15, %19 : vector<8x128xi1>, vector<8x128xf32>
    %cst_12 = arith.constant dense<0xFF800000> : vector<8xf32>
    %21 = vector.multi_reduction <maximumf>, %20, %cst_12 [1] : vector<8x128xf32> to vector<8xf32>
    %22 = vector.shape_cast %21 : vector<8xf32> to vector<8x1xf32>
    %23 = vector.broadcast %22 : vector<8x1xf32> to vector<8x128xf32>
    %24 = arith.cmpf oge, %20, %23 : vector<8x128xf32>
    %c128_i32 = arith.constant 128 : i32
    %25 = vector.broadcast %c128_i32 : i32 to vector<8x128xi32>
    %26 = arith.select %24, %16, %25 : vector<8x128xi1>, vector<8x128xi32>
    %cst_13 = arith.constant dense<2147483647> : vector<8xi32>
    %27 = vector.multi_reduction <minsi>, %26, %cst_13 [1] : vector<8x128xi32> to vector<8xi32>
    %28 = vector.shape_cast %27 : vector<8xi32> to vector<8x1xi32>
    %29 = vector.shape_cast %28 : vector<8x1xi32> to vector<8x1xi32>
    %30 = vector.broadcast %29 : vector<8x1xi32> to vector<8x128xi32>
    %c0_14 = arith.constant 0 : index
    %c0_15 = arith.constant 0 : index
    %31 = vector.load %arg6[%c0_14, %c0_15] : memref<8x128xi32, #tpu.memory_space<vmem>>, vector<8x128xi32>
    tpu.vector_store %arg6[%c0_14, %c0_15], %30 {strides = array<i32>} : memref<8x128xi32, #tpu.memory_space<vmem>>, vector<8x128xi32>,
    return
  }
  func.func @transform_0(%arg0: i32) -> (i32, i32) {
    %c0_i32 = arith.constant 0 : i32
    %c0_i32_0 = arith.constant 0 : i32
    return %arg0, %c0_i32 : i32, i32
  }
  func.func @transform_1(%arg0: i32) -> (i32, i32) {
    %c0_i32 = arith.constant 0 : i32
    %c0_i32_0 = arith.constant 0 : i32
    %c0_i32_1 = arith.constant 0 : i32
    return %c0_i32, %c0_i32_0 : i32, i32
  }
  func.func @transform_2(%arg0: i32) -> (i32, i32) {
    %c0_i32 = arith.constant 0 : i32
    %c0_i32_0 = arith.constant 0 : i32
    %c0_i32_1 = arith.constant 0 : i32
    return %c0_i32, %c0_i32_0 : i32, i32
  }
  func.func @transform_3(%arg0: i32) -> (i32, i32) {
    %c0_i32 = arith.constant 0 : i32
    %c0_i32_0 = arith.constant 0 : i32
    %c0_i32_1 = arith.constant 0 : i32
    return %c0_i32, %c0_i32_0 : i32, i32
  }
  func.func @transform_4(%arg0: i32) -> (i32, i32) {
    %c0_i32 = arith.constant 0 : i32
    %c0_i32_0 = arith.constant 0 : i32
    %c0_i32_1 = arith.constant 0 : i32
    return %c0_i32, %c0_i32_0 : i32, i32
  }
  func.func @transform_5(%arg0: i32) -> (i32, i32) {
    %c0_i32 = arith.constant 0 : i32
    %c0_i32_0 = arith.constant 0 : i32
    return %arg0, %c0_i32 : i32, i32
  }
}

</mosaic_0001>

<llo_original>
// kernel: run.1
$region0: #{run.1}
  #allocation0 [shape = 'u32[]', space=smem, size = 0x4, offset = 0x4, fixed_abs, tag = 'smem constant byte address 0x4 - core index']
  #allocation1 [shape = 'u32[144,128]{1,0:T(1,128)}', space=vmem, size = 0x12000, scoped, tag = 'internal scratch']
  %s0 = inlined_call_operand.vmem [shape: f32[8,128], index: 0, kind: input, shape index: {}]
  %s1 = inlined_call_operand.hbm [shape: f32[128,8], index: 1, kind: input, shape index: {}]
  %s2 = inlined_call_operand.vmem [shape: f32[1,8], index: 2, kind: input, shape index: {}]
  %s3 = inlined_call_operand.vmem [shape: f32[8,128], index: 3, kind: input, shape index: {}]
  %s4 = inlined_call_operand.vmem [shape: f32[1,128], index: 4, kind: input, shape index: {}]
  %s5 = inlined_call_operand.vmem [shape: s32[8,128], index: 5, kind: output, shape index: {}]
  %s6 = sld [smem:[#allocation0]]
  $region34: #{run.1} parent=0
    _
  %s8 = ssub.s32 1, %s6
  %s9 = scalar_select 0, %s8, %s6
  $region1: #{run.1} parent=0
    #allocation2 [shape = 'u8[65536]{0}', space=vmem, size = 0x10000, scoped, tag = 'input window, operand 1, single buffered']
    #allocation3 [shape = 's32[1]{0}', space=sflag, size = 0x4, scoped, tag = 'scoped memory for run.1']
    %10 = vsyncpa [#allocation3], 0
    // Predicated region
    $region2: #{run.1} parent=1 // pred_check
      _
    $region3: #{run.1} parent=1 // pred_check_branch
      %12 = sbr.rel (0) target = $region5
    $region4: #{run.1} parent=1 // pred_region
      _
    $region5: #{run.1} parent=1 // pred_fallthru
      _
    // Predicated region
    $region6: #{run.1} parent=1 // pred_check
      _
    $region7: #{run.1} parent=1 // pred_check_branch
      %14 = sbr.rel (0) target = $region9
    $region8: #{run.1} parent=1 // pred_region
      %s16 = ssub.s32 2048, 2048
      %17 = vsyncadd [#allocation3], %s16
      %s18 = sshll.u32 [#allocation2], 4
      %s19 = int_to_ptr.vmem [resolvable:$true] %s18
      %24 = dma.hbm_to_vmem [thread:$0]  %s1, 2048, %s19, [#allocation3], 128, 128, 8
    $region9: #{run.1} parent=1 // pred_fallthru
      _
    // Predicated region
    $region10: #{run.1} parent=1 // pred_check
      _
    $region11: #{run.1} parent=1 // pred_check_branch
      %26 = sbr.rel (0) target = $region13
    $region12: #{run.1} parent=1 // pred_region
      _
    $region13: #{run.1} parent=1 // pred_fallthru
      _
    // Predicated region
    $region14: #{run.1} parent=1 // pred_check
      _
    $region15: #{run.1} parent=1 // pred_check_branch
      %28 = sbr.rel (0) target = $region17
    $region16: #{run.1} parent=1 // pred_region
      _
    $region17: #{run.1} parent=1 // pred_fallthru
      _
    // Predicated region
    $region18: #{run.1} parent=1 // pred_check
      _
    $region19: #{run.1} parent=1 // pred_check_branch
      %30 = sbr.rel (0) target = $region21
    $region20: #{run.1} parent=1 // pred_region
      _
    $region21: #{run.1} parent=1 // pred_fallthru
      _
    // Predicated region
    $region22: #{run.1} parent=1 // pred_check
      _
    $region23: #{run.1} parent=1 // pred_check_branch
      %32 = sbr.rel (0) target = $region25
    $region24: #{run.1} parent=1 // pred_region
      %33 = dma.done [#allocation3], 2048
    $region25: #{run.1} parent=1 // pred_fallthru
      _
    %v34 = vld [vmem:[%s0] sm:$0xff]
    %v35 = vld [vmem:[#allocation2] sm:$0xff]
    %v36 = vld [vmem:[#allocation2 + $0x8] sm:$0xff]
    %v37 = vld [vmem:[#allocation2 + $0x10] sm:$0xff]
    %v38 = vld [vmem:[#allocation2 + $0x18] sm:$0xff]
    %v39 = vld [vmem:[#allocation2 + $0x20] sm:$0xff]
    %v40 = vld [vmem:[#allocation2 + $0x28] sm:$0xff]
    %v41 = vld [vmem:[#allocation2 + $0x30] sm:$0xff]
    %v42 = vld [vmem:[#allocation2 + $0x38] sm:$0xff]
    %v43 = vld [vmem:[#allocation2 + $0x40] sm:$0xff]
    %v44 = vld [vmem:[#allocation2 + $0x48] sm:$0xff]
    %v45 = vld [vmem:[#allocation2 + $0x50] sm:$0xff]
    %v46 = vld [vmem:[#allocation2 + $0x58] sm:$0xff]
    %v47 = vld [vmem:[#allocation2 + $0x60] sm:$0xff]
    %v48 = vld [vmem:[#allocation2 + $0x68] sm:$0xff]
    %v49 = vld [vmem:[#allocation2 + $0x70] sm:$0xff]
    %v50 = vld [vmem:[#allocation2 + $0x78] sm:$0xff]
    %v51 = vld [vmem:[%s2] sm:$0x1]
    %v53 = vlaneseq
    %v54 = vshrl.u32 %v53, 7
    %v55 = vsub.s32 0, %v54
    %v56 = vrot.slane %v51, %v55
    %58 = vmatprep.subr.mxu0 0.0
    %59 = vmatpush1.msra.mxu0 %v35
    %60 = vmatprep.subr.mxu0 0.0
    %61 = vmatpush1.msra.mxu0 %v36
    %62 = vmatprep.subr.mxu0 0.0
    %63 = vmatpush1.msra.mxu0 %v37
    %64 = vmatprep.subr.mxu0 0.0
    %65 = vmatpush1.msra.mxu0 %v38
    %66 = vmatprep.subr.mxu0 0.0
    %67 = vmatpush1.msra.mxu0 %v39
    %68 = vmatprep.subr.mxu0 0.0
    %69 = vmatpush1.msra.mxu0 %v40
    %70 = vmatprep.subr.mxu0 0.0
    %71 = vmatpush1.msra.mxu0 %v41
    %72 = vmatprep.subr.mxu0 0.0
    %73 = vmatpush1.msra.mxu0 %v42
    %74 = vmatprep.subr.mxu0 0.0
    %75 = vmatpush1.msra.mxu0 %v43
    %76 = vmatprep.subr.mxu0 0.0
    %77 = vmatpush1.msra.mxu0 %v44
    %78 = vmatprep.subr.mxu0 0.0
    %79 = vmatpush1.msra.mxu0 %v45
    %80 = vmatprep.subr.mxu0 0.0
    %81 = vmatpush1.msra.mxu0 %v46
    %82 = vmatprep.subr.mxu0 0.0
    %83 = vmatpush1.msra.mxu0 %v47
    %84 = vmatprep.subr.mxu0 0.0
    %85 = vmatpush1.msra.mxu0 %v48
    %86 = vmatprep.subr.mxu0 0.0
    %87 = vmatpush1.msra.mxu0 %v49
    %88 = vmatprep.subr.mxu0 0.0
    %89 = vmatpush1.msra.mxu0 %v50
    %90 = vmatprep.subr.mxu0 0.0
    %91 = vmatpush1.msra.mxu0 0.0
    %92 = vmatprep.subr.mxu0 0.0
    %93 = vmatpush1.msra.mxu0 0.0
    %94 = vmatprep.subr.mxu0 0.0
    %95 = vmatpush1.msra.mxu0 0.0
    %96 = vmatprep.subr.mxu0 0.0
    %97 = vmatpush1.msra.mxu0 0.0
    %98 = vmatprep.subr.mxu0 0.0
    %99 = vmatpush1.msra.mxu0 0.0
    %100 = vmatprep.subr.mxu0 0.0
    %101 = vmatpush1.msra.mxu0 0.0
    %102 = vmatprep.subr.mxu0 0.0
    %103 = vmatpush1.msra.mxu0 0.0
    %104 = vmatprep.subr.mxu0 0.0
    %105 = vmatpush1.msra.mxu0 0.0
    %106 = vmatprep.subr.mxu0 0.0
    %107 = vmatpush1.msra.mxu0 0.0
    %108 = vmatprep.subr.mxu0 0.0
    %109 = vmatpush1.msra.mxu0 0.0
    %110 = vmatprep.subr.mxu0 0.0
    %111 = vmatpush1.msra.mxu0 0.0
    %112 = vmatprep.subr.mxu0 0.0
    %113 = vmatpush1.msra.mxu0 0.0
    %114 = vmatprep.subr.mxu0 0.0
    %115 = vmatpush1.msra.mxu0 0.0
    %116 = vmatprep.subr.mxu0 0.0
    %117 = vmatpush1.msra.mxu0 0.0
    %118 = vmatprep.subr.mxu0 0.0
    %119 = vmatpush1.msra.mxu0 0.0
    %120 = vmatprep.subr.mxu0 0.0
    %121 = vmatpush1.msra.mxu0 0.0
    %122 = vmatprep.mubr.f32.mxu0 0.0
    %123 = vmatmul.mubr.f32.gmra.mrb[0].mxu0 %v34
    %v124 = vpop.f32.mrb[0].mxu0
    %v125 = vadd.f32 %v56, %v124
    %v126 = vpop.f32.mrb[0].mxu0
    %127 = vdwg.mxu0
    %v128 = vxor.u32 %v125, 2147483648
    %v129 = vmul.f32 %v128, 1.442695
    %v130 = vpow.pop %v129
    %v131 = vadd.f32 %v130, 1.0
    %v132 = vrcp.pop %v131
    %v133 = vmul.f32 1.0, %v132
    %v134 = vld [vmem:[%s3] sm:$0xff]
    %v135 = vld [vmem:[%s4] sm:$0x1]
    %v137 = vlaneseq
    %v138 = vshrl.u32 %v137, 7
    %v139 = vsub.s32 0, %v138
    %v140 = vrot.slane %v135, %v139
    %vm142 = vcmask 64512
    %v144 = vsel %vm142, %v133, 0
    %146 = vmatprep.subr.mxu0 0.0
    %147 = vmatpush1.msra.mxu0 %v134
    %148 = vmatprep.subr.mxu0 0.0
    %149 = vmatpush1.msra.mxu0 0.0
    %150 = vmatprep.subr.mxu0 0.0
    %151 = vmatpush1.msra.mxu0 0.0
    %152 = vmatprep.subr.mxu0 0.0
    %153 = vmatpush1.msra.mxu0 0.0
    %154 = vmatprep.subr.mxu0 0.0
    %155 = vmatpush1.msra.mxu0 0.0
    %156 = vmatprep.subr.mxu0 0.0
    %157 = vmatpush1.msra.mxu0 0.0
    %158 = vmatprep.subr.mxu0 0.0
    %159 = vmatpush1.msra.mxu0 0.0
    %160 = vmatprep.subr.mxu0 0.0
    %161 = vmatpush1.msra.mxu0 0.0
    %162 = vmatprep.subr.mxu0 0.0
    %163 = vmatpush1.msra.mxu0 0.0
    %164 = vmatprep.subr.mxu0 0.0
    %165 = vmatpush1.msra.mxu0 0.0
    %166 = vmatprep.subr.mxu0 0.0
    %167 = vmatpush1.msra.mxu0 0.0
    %168 = vmatprep.subr.mxu0 0.0
    %169 = vmatpush1.msra.mxu0 0.0
    %170 = vmatprep.subr.mxu0 0.0
    %171 = vmatpush1.msra.mxu0 0.0
    %172 = vmatprep.subr.mxu0 0.0
    %173 = vmatpush1.msra.mxu0 0.0
    %174 = vmatprep.subr.mxu0 0.0
    %175 = vmatpush1.msra.mxu0 0.0
    %176 = vmatprep.subr.mxu0 0.0
    %177 = vmatpush1.msra.mxu0 0.0
    %178 = vmatprep.subr.mxu0 0.0
    %179 = vmatpush1.msra.mxu0 0.0
    %180 = vmatprep.subr.mxu0 0.0
    %181 = vmatpush1.msra.mxu0 0.0
    %182 = vmatprep.subr.mxu0 0.0
    %183 = vmatpush1.msra.mxu0 0.0
    %184 = vmatprep.subr.mxu0 0.0
    %185 = vmatpush1.msra.mxu0 0.0
    %186 = vmatprep.subr.mxu0 0.0
    %187 = vmatpush1.msra.mxu0 0.0
    %188 = vmatprep.subr.mxu0 0.0
    %189 = vmatpush1.msra.mxu0 0.0
    %190 = vmatprep.subr.mxu0 0.0
    %191 = vmatpush1.msra.mxu0 0.0
    %192 = vmatprep.subr.mxu0 0.0
    %193 = vmatpush1.msra.mxu0 0.0
    %194 = vmatprep.subr.mxu0 0.0
    %195 = vmatpush1.msra.mxu0 0.0
    %196 = vmatprep.subr.mxu0 0.0
    %197 = vmatpush1.msra.mxu0 0.0
    %198 = vmatprep.subr.mxu0 0.0
    %199 = vmatpush1.msra.mxu0 0.0
    %200 = vmatprep.subr.mxu0 0.0
    %201 = vmatpush1.msra.mxu0 0.0
    %202 = vmatprep.subr.mxu0 0.0
    %203 = vmatpush1.msra.mxu0 0.0
    %204 = vmatprep.subr.mxu0 0.0
    %205 = vmatpush1.msra.mxu0 0.0
    %206 = vmatprep.subr.mxu0 0.0
    %207 = vmatpush1.msra.mxu0 0.0
    %208 = vmatprep.subr.mxu0 0.0
    %209 = vmatpush1.msra.mxu0 0.0
    %210 = vmatprep.mubr.f32.mxu0 0.0
    %211 = vmatmul.mubr.f32.gmra.mrb[0].mxu0 %v144
    %v212 = vpop.f32.mrb[0].mxu0
    %v213 = vadd.f32 %v140, %v212
    %v214 = vpop.f32.mrb[0].mxu0
    %215 = vdwg.mxu0
    %v216 = vlaneseq
    %v217 = vand.u32 %v216, 127
    %vm218 = vcmp.lt.s32.totalorder %v217, 8
    %v219 = vsel %vm218, %v213, -inf
    %220 = vmax.xlane.f32.xlu0 %v219
    %v221 = vpop.xlane.xlu0 %220
    %vm222 = vcmp.ge.f32.partialorder %v219, %v221
    %v223 = vsel %vm222, %v217, 128
    %v224 = vand.u32 %v223, 65535
    %v225 = vshra.s32 %v223, 16
    %v226 = vcvt.s32.f32 %v224
    %v227 = vcvt.s32.f32 %v225
    %228 = vmin.xlane.f32.xlu0 %v227
    %v229 = vpop.xlane.xlu0 %228
    %vm230 = vcmp.eq.f32.partialorder %v227, %v229
    %v231 = vsel %vm230, %v226, inf
    %232 = vmin.xlane.f32.xlu0 %v231
    %v233 = vpop.xlane.xlu0 %232
    %v234 = vcvt.f32.s32 %v233
    %v235 = vcvt.f32.s32 %v229
    %v236 = vshll.u32 %v235, 16
    %v237 = vadd.s32 %v236, %v234
    %238 = vst [vmem:[%s5] sm:$0xff] %v237
    // Predicated region
    $region26: #{run.1} parent=1 // pred_check
      _
    $region27: #{run.1} parent=1 // pred_check_branch
      %240 = sbr.rel (0) target = $region29
    $region28: #{run.1} parent=1 // pred_region
      _
    $region29: #{run.1} parent=1 // pred_fallthru
      _
    // Predicated region
    $region30: #{run.1} parent=1 // pred_check
      _
    $region31: #{run.1} parent=1 // pred_check_branch
      %242 = sbr.rel (0) target = $region33
    $region32: #{run.1} parent=1 // pred_region
      _
    $region33: #{run.1} parent=1 // pred_fallthru
      _
    %243 = vsyncpa [#allocation3], 1

</llo_original>
